<compile_context>
chip_gen: v7x
topology: tpu7x:2x2x1
jax: 0.10.0
libtpu: 0.0.40
codegen_flags: <defaults>
</compile_context>

<pallas_src>
import jax
import jax.numpy as jnp
from jax import lax
from jax.experimental import pallas as pl
from jax.experimental.pallas import tpu as pltpu


# --------------------------------------------------------------------------------------
# Kernel
# --------------------------------------------------------------------------------------
def _moe_ffn_kernel(eff_e_ref, hit_ref,                 # scalar prefetch (SMEM)
                    x_ref, w13_ref, w2_ref, cw_ref,     # VMEM inputs
                    o_ref,                              # VMEM output
                    acc_ref):                           # VMEM scratch (f32)
    i = pl.program_id(0)   # token tile
    s = pl.program_id(1)   # compacted (active) expert slot
    d = pl.program_id(2)   # expert_dim chunk
    num_slots = pl.num_programs(1)

    @pl.when(jnp.logical_and(s == 0, d == 0))
    def _():
        acc_ref[...] = jnp.zeros_like(acc_ref)

    # Compute only when this (token tile, expert slot) pair actually receives tokens.
    @pl.when(hit_ref[i * num_slots + s] > 0)
    def _():
        x = x_ref[...]             # (tT, H)
        w13 = w13_ref[0]           # (2*tD, H)  = [w1 chunk ; w3 chunk]
        w2 = w2_ref[0]             # (H, tD)
        td = w2.shape[1]
        dn = (((1,), (1,)), ((), ()))   # contract last dims directly (no transposes)

        y13 = lax.dot_general(x, w13, dn, preferred_element_type=jnp.float32)  # (tT, 2*tD)
        y1 = y13[:, :td]
        y3 = y13[:, td:]
        g = y1 * jax.nn.sigmoid(y1)                                            # SiLU (EUP)
        # Apply combine weight on the narrow tD axis (f32) before the activation-dtype cast.
        h = (g * y3 * cw_ref[0]).astype(x.dtype)                               # (tT, tD)
        acc_ref[...] += lax.dot_general(h, w2, dn, preferred_element_type=jnp.float32)

    @pl.when(jnp.logical_and(s == pl.num_programs(1) - 1,
                             d == pl.num_programs(2) - 1))
    def _():
        o_ref[...] = acc_ref[...].astype(o_ref.dtype)


# --------------------------------------------------------------------------------------
# Tiling / VMEM sizing helpers
# --------------------------------------------------------------------------------------
def _vmem_budget_bytes():
    """Generation-aware VMEM budget (v7x: 64 MiB/TC, v5e/v6e: 128 MiB)."""
    cap = 64 * 1024 * 1024
    try:
        info = pltpu.get_tpu_info()
        cap = int(getattr(info, "vmem_capacity_bytes", cap) or cap)
    except Exception:
        pass
    return int(min(cap * 3 // 4, 100 * 1024 * 1024))


def _pick_tiles(num_tokens, hidden_dim, expert_dim, act_bytes, w_bytes, budget):
    """Pick (token_tile, d_tile) so the double-buffered working set fits `budget`."""

    def d_tile_for(cap_elems):
        cap = max(128, min(int(cap_elems), expert_dim, 1024))
        if expert_dim <= cap:
            return expert_dim
        for t in range(cap - cap % 128, 127, -128):
            if expert_dim % t == 0:
                return t
        return expert_dim

    # Token-tile candidates: whole-T for decode / small prefill (weights stream once);
    # MXU / bf16-sublane-packing friendly multiples for larger T.
    if num_tokens <= 256:
        tt_cands = [num_tokens]
    else:
        tt_cands = [c for c in (512, 384, 256, 128, 64, 32, 16) if num_tokens % c == 0]
        tt_cands = tt_cands or [num_tokens]

    for tt in tt_cands:
        # Token-side resident VMEM: x (2 bufs) + out (2 bufs) + f32 accumulator scratch.
        tok_bytes = tt * hidden_dim * (2 * act_bytes + 2 * act_bytes + 4)
        remaining = budget - tok_bytes - (2 << 20)          # headroom (cw, semaphores, ...)
        if remaining <= 0:
            continue
        # Weight blocks per buffer: w13 (2*dt, H) + w2 (H, dt) = 3*dt*H elems, double-buffered.
        max_dt = remaining // (6 * hidden_dim * w_bytes)
        if max_dt < min(128, expert_dim):
            continue
        return tt, d_tile_for(max_dt)

    # Last resort: small tiles.
    tt = (num_tokens if num_tokens <= 256 else
          next((c for c in (128, 64, 32, 16, 8) if num_tokens % c == 0), num_tokens))
    return tt, d_tile_for(128)


# --------------------------------------------------------------------------------------
# Wrapper
# --------------------------------------------------------------------------------------
def conditional_feed_forward(x, w1, w2, w3, expert_indices, expert_weights, top_k,
                             token_tile=None, d_tile=None, vmem_limit_bytes=None):
    """MoE expert FFN.  x:(T,H), w1/w3:(E,D,H), w2:(E,H,D),
    expert_indices/expert_weights:(T,top_k) -> (T,H)."""
    num_tokens, hidden_dim = x.shape
    num_experts, expert_dim, _ = w1.shape
    assert expert_indices.shape == (num_tokens, top_k)
    assert expert_weights.shape == (num_tokens, top_k)

    budget = _vmem_budget_bytes() if vmem_limit_bytes is None else int(vmem_limit_bytes)
    auto_tt, auto_dt = _pick_tiles(num_tokens, hidden_dim, expert_dim,
                                   jnp.dtype(x.dtype).itemsize,
                                   jnp.dtype(w1.dtype).itemsize, budget)
    token_tile = auto_tt if token_tile is None else token_tile
    d_tile = auto_dt if d_tile is None else d_tile
    assert num_tokens % token_tile == 0
    assert expert_dim % d_tile == 0

    num_tiles = num_tokens // token_tile
    num_d = expert_dim // d_tile
    last_d = num_d - 1
    # Static upper bound on the number of experts that can be active.
    num_slots = min(num_experts, num_tokens * top_k)

    # ---- glue (outside kernel): densify routing into f32 combine weights -----------
    #   cw[e, t] = sum_k expert_weights[t, k] * [expert_indices[t, k] == e]
    one_hot = jax.nn.one_hot(expert_indices, num_experts, dtype=jnp.float32)       # (T, K, E)
    cw = jnp.einsum("tke,tk->et", one_hot, expert_weights.astype(jnp.float32))     # (E, T) f32
    cw3 = cw[:, :, None]                                                            # (E, T, 1)

    # Active-expert compaction: active expert ids first (ascending).
    counts = jnp.sum(one_hot, axis=(0, 1))                                          # (E,)
    active_mask = counts > 0
    num_active = jnp.sum(active_mask).astype(jnp.int32)
    idx = jnp.arange(num_experts, dtype=jnp.int32)
    order = jnp.argsort(jnp.where(active_mask, idx, idx + num_experts)).astype(jnp.int32)
    last_active = order[jnp.maximum(num_active - 1, 0)]
    slot_idx = jnp.arange(num_slots, dtype=jnp.int32)
    active_ids = jnp.where(slot_idx < num_active, order[:num_slots], last_active).astype(jnp.int32)

    # Per-(token tile, slot) hit bitmap.  cw == 0 (routed but zero weight) is skipped:
    # its contribution is exactly zero.  Padded tail slots (s >= num_active) never hit.
    tile_hits = (cw.reshape(num_experts, num_tiles, token_tile) != 0).any(axis=-1)  # (E, tiles)
    slot_hits = tile_hits[active_ids, :].T                                          # (tiles, slots)
    hit = jnp.logical_and(slot_idx[None, :] < num_active, slot_hits)                # (tiles, slots)
    hit_flat = hit.reshape(-1).astype(jnp.int32)                                    # (P,)

    # Effective expert id per (tile, slot) in grid iteration order: on a miss we carry the
    # previous effective id forward, so miss runs keep the SAME weight block index and
    # trigger zero extra weight DMAs.
    e_cand = jnp.tile(active_ids, num_tiles)                                        # (P,)

    def _carry(prev, xs):
        h, e = xs
        eff = jnp.where(h > 0, e, prev)
        return eff, eff

    _, eff_e_flat = lax.scan(_carry, active_ids[0], (hit_flat, e_cand))
    eff_e_flat = eff_e_flat.astype(jnp.int32)                                       # (P,)

    # Fuse w1/w3 into one chunk-interleaved stacked weight (E, 2*D, H): chunk d holds
    # [w1 rows d*dt:(d+1)*dt ; w3 rows d*dt:(d+1)*dt].  (Pre-stack at load time in prod.)
    w1r = w1.reshape(num_experts, num_d, d_tile, hidden_dim)
    w3r = w3.reshape(num_experts, num_d, d_tile, hidden_dim)
    w13 = jnp.concatenate([w1r, w3r], axis=2).reshape(num_experts, 2 * expert_dim, hidden_dim)

    # ---- index maps (scalar-prefetch refs passed positionally) ----------------------
    def x_map(i, s, d, eff_e, hit):
        return (i, 0)

    def w13_map(i, s, d, eff_e, hit):
        p = i * num_slots + s
        h = hit[p]
        dd = d * h + last_d * (1 - h)        # freeze D-chunk on misses -> no new DMA
        return (eff_e[p], dd, 0)

    def w2_map(i, s, d, eff_e, hit):
        p = i * num_slots + s
        h = hit[p]
        dd = d * h + last_d * (1 - h)
        return (eff_e[p], 0, dd)

    def cw_map(i, s, d, eff_e, hit):
        return (eff_e[i * num_slots + s], i, 0)

    def o_map(i, s, d, eff_e, hit):
        return (i, 0)

    grid = (num_tiles, num_slots, num_d)

    return pl.pallas_call(
        _moe_ffn_kernel,
        out_shape=jax.ShapeDtypeStruct((num_tokens, hidden_dim), x.dtype),
        grid_spec=pltpu.PrefetchScalarGridSpec(
            num_scalar_prefetch=2,
            grid=grid,
            in_specs=[
                pl.BlockSpec((token_tile, hidden_dim), x_map),
                pl.BlockSpec((1, 2 * d_tile, hidden_dim), w13_map),   # fused w1/w3
                pl.BlockSpec((1, hidden_dim, d_tile), w2_map),        # w2
                pl.BlockSpec((1, token_tile, 1), cw_map),             # combine weights (f32)
            ],
            out_specs=pl.BlockSpec((token_tile, hidden_dim), o_map),
            scratch_shapes=[pltpu.VMEM((token_tile, hidden_dim), jnp.float32)],
        ),
        compiler_params=pltpu.CompilerParams(
            dimension_semantics=("parallel", "arbitrary", "arbitrary"),
            vmem_limit_bytes=budget),
    )(eff_e_flat, hit_flat, x, w13, w2, cw3)


# --------------------------------------------------------------------------------------
# Pure-JAX reference (re-statement of the PyTorch forward)
# --------------------------------------------------------------------------------------
def _reference(x, w1, w2, w3, expert_indices, expert_weights, top_k):
    out = jnp.zeros_like(x)
    for k in range(top_k):
        e = expert_indices[:, k]                              # (T,)
        w1k, w3k, w2k = w1[e], w3[e], w2[e]                   # (T,D,H),(T,D,H),(T,H,D)
        y1 = jax.nn.silu(jnp.einsum("th,tdh->td", x, w1k))
        y3 = jnp.einsum("th,tdh->td", x, w3k)
        cur = jnp.einsum("td,thd->th", y1 * y3, w2k)
        out = out + expert_weights[:, k:k + 1].astype(jnp.float32) * cur
    return out.astype(x.dtype)


if __name__ == "__main__":
    num_tokens, hidden_dim, expert_dim = 8, 128, 128
    num_experts, top_k = 4, 2

    key = jax.random.PRNGKey(0)
    k_x, k_w1, k_w2, k_w3, k_idx, k_wt = jax.random.split(key, 6)

    x = jax.random.normal(k_x, (num_tokens, hidden_dim), dtype=jnp.float32)
    w1 = jax.random.normal(k_w1, (num_experts, expert_dim, hidden_dim), jnp.float32) / hidden_dim**0.5
    w2 = jax.random.normal(k_w2, (num_experts, hidden_dim, expert_dim), jnp.float32) / expert_dim**0.5
    w3 = jax.random.normal(k_w3, (num_experts, expert_dim, hidden_dim), jnp.float32) / hidden_dim**0.5

    expert_indices = jax.random.randint(k_idx, (num_tokens, top_k), 0, num_experts, dtype=jnp.int32)
    expert_weights = jax.nn.softmax(
        jax.random.normal(k_wt, (num_tokens, top_k), jnp.float32), axis=-1)

    out = conditional_feed_forward(x, w1, w2, w3, expert_indices, expert_weights, top_k)
    out = jax.block_until_ready(out)

    ref = _reference(x, w1, w2, w3, expert_indices, expert_weights, top_k)
    assert out.shape == (num_tokens, hidden_dim)
    assert jnp.allclose(out, ref, atol=1e-4, rtol=1e-4), float(jnp.max(jnp.abs(out - ref)))

    print("KERNEL_OK")
</pallas_src>

<mosaic_0001>
module attributes {stable_mosaic.version = 11 : i64} {
  func.func @_moe_ffn_kernel(%arg0: i32, %arg1: i32, %arg2: i32, %arg3: memref<4xi32, #tpu.memory_space<smem>>, %arg4: memref<4xi32, #tpu.memory_space<smem>>, %arg5: memref<8x128xf32, #tpu.memory_space<vmem>>, %arg6: memref<1x256x128xf32, #tpu.memory_space<vmem>>, %arg7: memref<1x128x128xf32, #tpu.memory_space<vmem>>, %arg8: memref<1x8x1xf32, #tpu.memory_space<vmem>>, %arg9: memref<8x128xf32, #tpu.memory_space<vmem>>, %arg10: memref<8x128xf32, #tpu.memory_space<vmem>>) attributes {dimension_semantics = [#tpu.dimension_semantics<parallel>, #tpu.dimension_semantics<arbitrary>, #tpu.dimension_semantics<arbitrary>], iteration_bounds = array<i64: 1, 4, 1>, scalar_prefetch = 2 : i64, scratch_operands = 1 : i64, tpu.core_type = #tpu.core_type<tc>, window_params = [{transform_indices = @transform_0, window_bounds = array<i64: 8, 128>}, {transform_indices = @transform_1, window_bounds = array<i64: 1, 256, 128>}, {transform_indices = @transform_2, window_bounds = array<i64: 1, 128, 128>}, {transform_indices = @transform_3, window_bounds = array<i64: 1, 8, 1>}, {transform_indices = @transform_4, window_bounds = array<i64: 8, 128>}]} {
    %c0_i32 = arith.constant 0 : i32
    %0 = arith.cmpi eq, %arg1, %c0_i32 : i32
    %c0_i32_0 = arith.constant 0 : i32
    %1 = arith.cmpi eq, %arg2, %c0_i32_0 : i32
    %2 = arith.andi %0, %1 : i1
    %3 = arith.extui %2 : i1 to i32
    %c0_i32_1 = arith.constant 0 : i32
    %4 = arith.cmpi ne, %3, %c0_i32_1 : i32
    scf.if %4 {
      %cst = arith.constant 0.000000e+00 : f32
      %17 = vector.broadcast %cst : f32 to vector<8x128xf32>
      %c0 = arith.constant 0 : index
      %c0_6 = arith.constant 0 : index
      %18 = vector.load %arg10[%c0, %c0_6] : memref<8x128xf32, #tpu.memory_space<vmem>>, vector<8x128xf32>
      tpu.vector_store %arg10[%c0, %c0_6], %17 {strides = array<i32>} : memref<8x128xf32, #tpu.memory_space<vmem>>, vector<8x128xf32>,
    } else {
    }
    %c4_i32 = arith.constant 4 : i32
    %5 = arith.muli %arg0, %c4_i32 : i32
    %6 = arith.addi %5, %arg1 : i32
    %7 = arith.index_cast %6 : i32 to index
    %8 = memref.load %arg4[%7] : memref<4xi32, #tpu.memory_space<smem>>
    %c0_i32_2 = arith.constant 0 : i32
    %9 = arith.cmpi sgt, %8, %c0_i32_2 : i32
    %10 = arith.extui %9 : i1 to i32
    %c0_i32_3 = arith.constant 0 : i32
    %11 = arith.cmpi ne, %10, %c0_i32_3 : i32
    scf.if %11 {
      %c0 = arith.constant 0 : index
      %c0_6 = arith.constant 0 : index
      %17 = vector.load %arg5[%c0, %c0_6] : memref<8x128xf32, #tpu.memory_space<vmem>>, vector<8x128xf32>
      %c0_7 = arith.constant 0 : index
      %c0_8 = arith.constant 0 : index
      %c0_9 = arith.constant 0 : index
      %18 = vector.load %arg6[%c0_7, %c0_8, %c0_9] : memref<1x256x128xf32, #tpu.memory_space<vmem>>, vector<1x256x128xf32>
      %19 = vector.shape_cast %18 : vector<1x256x128xf32> to vector<256x128xf32>
      %c0_10 = arith.constant 0 : index
      %c0_11 = arith.constant 0 : index
      %c0_12 = arith.constant 0 : index
      %20 = vector.load %arg7[%c0_10, %c0_11, %c0_12] : memref<1x128x128xf32, #tpu.memory_space<vmem>>, vector<1x128x128xf32>
      %21 = vector.shape_cast %20 : vector<1x128x128xf32> to vector<128x128xf32>
      %cst = arith.constant dense<0.000000e+00> : vector<8x256xf32>
      %22 = tpu.matmul %17, %19, %cst {dimension_numbers = #tpu.dot_dimension_numbers<[1], [1], [0], [0], [0, 0, 1, 0], [], []>} : vector<8x128xf32>, vector<256x128xf32>, vector<8x256xf32> -> vector<8x256xf32>
      %23 = vector.extract_strided_slice %22 {offsets = [0, 0], sizes = [8, 128], strides = [1, 1]} : vector<8x256xf32> to vector<8x128xf32>
      %24 = vector.extract_strided_slice %22 {offsets = [0, 128], sizes = [8, 128], strides = [1, 1]} : vector<8x256xf32> to vector<8x128xf32>
      %25 = arith.negf %23 : vector<8x128xf32>
      %26 = math.exp %25 : vector<8x128xf32>
      %cst_13 = arith.constant 1.000000e+00 : f32
      %27 = vector.broadcast %cst_13 : f32 to vector<8x128xf32>
      %28 = arith.addf %27, %26 : vector<8x128xf32>
      %29 = arith.divf %27, %28 : vector<8x128xf32>
      %30 = arith.mulf %23, %29 : vector<8x128xf32>
      %31 = arith.mulf %30, %24 : vector<8x128xf32>
      %c0_14 = arith.constant 0 : index
      %c0_15 = arith.constant 0 : index
      %c0_16 = arith.constant 0 : index
      %32 = vector.load %arg8[%c0_14, %c0_15, %c0_16] : memref<1x8x1xf32, #tpu.memory_space<vmem>>, vector<1x8x1xf32>
      %33 = vector.shape_cast %32 : vector<1x8x1xf32> to vector<8x1xf32>
      %34 = vector.broadcast %33 : vector<8x1xf32> to vector<8x128xf32>
      %35 = arith.mulf %31, %34 : vector<8x128xf32>
      %c0_17 = arith.constant 0 : index
      %c0_18 = arith.constant 0 : index
      %36 = vector.load %arg10[%c0_17, %c0_18] : memref<8x128xf32, #tpu.memory_space<vmem>>, vector<8x128xf32>
      %cst_19 = arith.constant dense<0.000000e+00> : vector<8x128xf32>
      %37 = tpu.matmul %35, %21, %cst_19 {dimension_numbers = #tpu.dot_dimension_numbers<[1], [1], [0], [0], [0, 0, 1, 0], [], []>} : vector<8x128xf32>, vector<128x128xf32>, vector<8x128xf32> -> vector<8x128xf32>
      %38 = arith.addf %36, %37 : vector<8x128xf32>
      %c0_20 = arith.constant 0 : index
      %c0_21 = arith.constant 0 : index
      %39 = vector.load %arg10[%c0_20, %c0_21] : memref<8x128xf32, #tpu.memory_space<vmem>>, vector<8x128xf32>
      tpu.vector_store %arg10[%c0_20, %c0_21], %38 {strides = array<i32>} : memref<8x128xf32, #tpu.memory_space<vmem>>, vector<8x128xf32>,
    } else {
    }
    %c3_i32 = arith.constant 3 : i32
    %12 = arith.cmpi eq, %arg1, %c3_i32 : i32
    %c0_i32_4 = arith.constant 0 : i32
    %13 = arith.cmpi eq, %arg2, %c0_i32_4 : i32
    %14 = arith.andi %12, %13 : i1
    %15 = arith.extui %14 : i1 to i32
    %c0_i32_5 = arith.constant 0 : i32
    %16 = arith.cmpi ne, %15, %c0_i32_5 : i32
    scf.if %16 {
      %c0 = arith.constant 0 : index
      %c0_6 = arith.constant 0 : index
      %17 = vector.load %arg10[%c0, %c0_6] : memref<8x128xf32, #tpu.memory_space<vmem>>, vector<8x128xf32>
      %c0_7 = arith.constant 0 : index
      %c0_8 = arith.constant 0 : index
      %18 = vector.load %arg9[%c0_7, %c0_8] : memref<8x128xf32, #tpu.memory_space<vmem>>, vector<8x128xf32>
      tpu.vector_store %arg9[%c0_7, %c0_8], %17 {strides = array<i32>} : memref<8x128xf32, #tpu.memory_space<vmem>>, vector<8x128xf32>,
    } else {
    }
    return
  }
  func.func @transform_0(%arg0: i32, %arg1: i32, %arg2: i32, %arg3: memref<4xi32, #tpu.memory_space<smem>>, %arg4: memref<4xi32, #tpu.memory_space<smem>>) -> (i32, i32) {
    %c0_i32 = arith.constant 0 : i32
    %c0_i32_0 = arith.constant 0 : i32
    return %arg0, %c0_i32 : i32, i32
  }
  func.func @transform_1(%arg0: i32, %arg1: i32, %arg2: i32, %arg3: memref<4xi32, #tpu.memory_space<smem>>, %arg4: memref<4xi32, #tpu.memory_space<smem>>) -> (i32, i32, i32) {
    %c4_i32 = arith.constant 4 : i32
    %0 = arith.muli %arg0, %c4_i32 : i32
    %1 = arith.addi %0, %arg1 : i32
    %2 = arith.index_cast %1 : i32 to index
    %3 = memref.load %arg4[%2] : memref<4xi32, #tpu.memory_space<smem>>
    %4 = arith.muli %arg2, %3 : i32
    %c1_i32 = arith.constant 1 : i32
    %5 = arith.subi %c1_i32, %3 : i32
    %c0_i32 = arith.constant 0 : i32
    %6 = arith.muli %c0_i32, %5 : i32
    %7 = arith.addi %4, %6 : i32
    %8 = arith.index_cast %1 : i32 to index
    %9 = memref.load %arg3[%8] : memref<4xi32, #tpu.memory_space<smem>>
    %c0_i32_0 = arith.constant 0 : i32
    %c0_i32_1 = arith.constant 0 : i32
    return %9, %7, %c0_i32_0 : i32, i32, i32
  }
  func.func @transform_2(%arg0: i32, %arg1: i32, %arg2: i32, %arg3: memref<4xi32, #tpu.memory_space<smem>>, %arg4: memref<4xi32, #tpu.memory_space<smem>>) -> (i32, i32, i32) {
    %c4_i32 = arith.constant 4 : i32
    %0 = arith.muli %arg0, %c4_i32 : i32
    %1 = arith.addi %0, %arg1 : i32
    %2 = arith.index_cast %1 : i32 to index
    %3 = memref.load %arg4[%2] : memref<4xi32, #tpu.memory_space<smem>>
    %4 = arith.muli %arg2, %3 : i32
    %c1_i32 = arith.constant 1 : i32
    %5 = arith.subi %c1_i32, %3 : i32
    %c0_i32 = arith.constant 0 : i32
    %6 = arith.muli %c0_i32, %5 : i32
    %7 = arith.addi %4, %6 : i32
    %8 = arith.index_cast %1 : i32 to index
    %9 = memref.load %arg3[%8] : memref<4xi32, #tpu.memory_space<smem>>
    %c0_i32_0 = arith.constant 0 : i32
    %c0_i32_1 = arith.constant 0 : i32
    return %9, %c0_i32_0, %7 : i32, i32, i32
  }
  func.func @transform_3(%arg0: i32, %arg1: i32, %arg2: i32, %arg3: memref<4xi32, #tpu.memory_space<smem>>, %arg4: memref<4xi32, #tpu.memory_space<smem>>) -> (i32, i32, i32) {
    %c4_i32 = arith.constant 4 : i32
    %0 = arith.muli %arg0, %c4_i32 : i32
    %1 = arith.addi %0, %arg1 : i32
    %2 = arith.index_cast %1 : i32 to index
    %3 = memref.load %arg3[%2] : memref<4xi32, #tpu.memory_space<smem>>
    %c0_i32 = arith.constant 0 : i32
    %c0_i32_0 = arith.constant 0 : i32
    return %3, %arg0, %c0_i32 : i32, i32, i32
  }
  func.func @transform_4(%arg0: i32, %arg1: i32, %arg2: i32, %arg3: memref<4xi32, #tpu.memory_space<smem>>, %arg4: memref<4xi32, #tpu.memory_space<smem>>) -> (i32, i32) {
    %c0_i32 = arith.constant 0 : i32
    %c0_i32_0 = arith.constant 0 : i32
    return %arg0, %c0_i32 : i32, i32
  }
}

</mosaic_0001>

<llo_original>
// kernel: tpu_custom_call.1
$region0: #{tpu_custom_call.1}
  #allocation0 [shape = 'u32[]', space=smem, size = 0x4, offset = 0x4, fixed_abs, tag = 'smem constant byte address 0x4 - core index']
  #allocation1 [shape = 'u32[144,128]{1,0:T(1,128)}', space=vmem, size = 0x12000, scoped, tag = 'internal scratch']
  #allocation2 [shape = 'f32[8,128]{1,0:T(8,128)}', space=vmem, size = 0x1000, scoped, tag = 'scratch operand']
  #allocation3 [shape = 's32[1]{0}', space=sflag, size = 0x4, scoped, tag = 'scoped memory for tpu_custom_call.1']
  #allocation4 [shape = 'u8[512]{0}', space=smem, size = 0x200, scoped, tag = 'prefetched SMEM operand 0']
  #allocation5 [shape = 'u8[512]{0}', space=smem, size = 0x200, scoped, tag = 'prefetched SMEM operand 1']
  %s0 = inlined_call_operand.vmem [shape: s32[4], index: 0, kind: input, shape index: {}]
  %s1 = inlined_call_operand.vmem [shape: s32[4], index: 1, kind: input, shape index: {}]
  %s2 = inlined_call_operand.vmem [shape: f32[8,128], index: 2, kind: input, shape index: {}]
  %s3 = inlined_call_operand.hbm [shape: f32[4,256,128], index: 3, kind: input, shape index: {}]
  %s4 = inlined_call_operand.hbm [shape: f32[4,128,128], index: 4, kind: input, shape index: {}]
  %s5 = inlined_call_operand.vmem [shape: f32[4,8,1], index: 5, kind: input, shape index: {}]
  %s6 = inlined_call_operand.hbm [shape: f32[8,128], index: 6, kind: output, shape index: {}]
  %s7 = sld [smem:[#allocation0]]
  $region69: #{tpu_custom_call.1} parent=0
    _
  %s9 = ssub.s32 1, %s7
  %s10 = scalar_select 0, %s9, %s7
  %s11 = sshll.u32 %s0, 4
  %s12 = int_to_ptr.vmem [resolvable:$true] %s11
  %14 = dma.vmem_to_smem %s12, 16, [#allocation4], [#allocation3]
  %s15 = sshll.u32 %s1, 4
  %s16 = int_to_ptr.vmem [resolvable:$true] %s15
  %18 = dma.vmem_to_smem %s16, 16, [#allocation5], [#allocation3]
  %19 = dma.done [#allocation3], 32
  %20 = sfence
  $region1: #{tpu_custom_call.1} parent=0
    #allocation6 [shape = 'u8[262144]{0}', space=vmem, size = 0x40000, scoped, tag = 'input window, operand 3']
    #allocation7 [shape = 's32[2]{0}', space=sflag, size = 0x8, scoped, tag = 'scoped memory for tpu_custom_call.1']
    #allocation8 [shape = 's32[2]{0}', space=sflag, size = 0x8, scoped, tag = 'scoped memory for tpu_custom_call.1']
    #allocation9 [shape = 'u8[131072]{0}', space=vmem, size = 0x20000, scoped, tag = 'input window, operand 4']
    #allocation10 [shape = 's32[2]{0}', space=sflag, size = 0x8, scoped, tag = 'scoped memory for tpu_custom_call.1']
    #allocation11 [shape = 'u8[4096]{0}', space=vmem, size = 0x1000, scoped, tag = 'output window, operand 0, single buffered']
    %21 = vsyncpa [#allocation7], 0
    %s22 = scalar_lea.sflag [#allocation7], 1
    %23 = vsyncpa %s22, 0
    %24 = vsyncpa [#allocation10], 0
    %s25 = scalar_lea.sflag [#allocation10], 1
    %26 = vsyncpa %s25, 0
    %27 = vsyncpa [#allocation8], 0
    loop: start=0, step=1, limit=6
    $region2: #{tpu_custom_call.1} parent=1 // loop_pre_header
      _
    $region3: #{tpu_custom_call.1} parent=1 // loop_header
      %s29 = sphi 0, %s33
      %p30 = scmp.ge.s32.totalorder %s29, 6
      %s36 = sphi 0, %s55
      %s37 = sphi 0, %s51
      %s38 = sphi 0, %s47
      %s39 = sphi 0, %s36
      %s40 = sphi 0, %s37
      %s41 = sphi 0, %s38
      %s42 = sphi 0, %s39
      %s43 = sphi 0, %s40
      %s44 = sphi 0, %s41
      %s58 = sphi 0, %s60
      %s61 = sphi 0, %s58
      %s62 = sphi 0, %s61
      %s78 = sphi 0, %s62
      %s96 = sphi 0, %s98
      %s99 = sphi 0, %s96
      %s100 = sphi 0, %s99
      %s116 = sphi 0, %s100
      %s134 = sphi 0, %s136
      %s137 = sphi 0, %s134
      %s138 = sphi 0, %s137
      %s154 = sphi 0, %s138
      %s168 = sphi 0, %s170
      %s171 = sphi 0, %s168
      %s172 = sphi 0, %s171
      %s188 = sphi 0, %s172
      %s194 = sphi 0, %s196
      %s197 = sphi 0, %s194
      %s198 = sphi 0, %s197
      %s214 = sphi 0, %s198
    $region4: #{tpu_custom_call.1} parent=1 // loop_header_branch
      %32 = sbr.rel (%p30) target = $region8
    $region5: #{tpu_custom_call.1} parent=1 // loop_body
      %s34 = ssub.s32 %s29, 1
      %s35 = ssub.s32 %s29, 2
      %s45 = sadd.s32 1, %s38
      %p46 = scmp.ge.s32.totalorder %s45, 1
      %s47 = scalar_select %p46, 0, %s45
      %s48 = sadd.s32 1, %s37
      %s49 = scalar_select %p46, %s48, %s37
      %p50 = scmp.ge.s32.totalorder %s49, 4
      %s51 = scalar_select %p50, 0, %s49
      %s52 = sadd.s32 1, %s36
      %s53 = scalar_select %p50, %s52, %s36
      %p54 = scmp.ge.s32.totalorder %s53, 1
      %s55 = scalar_select %p54, 0, %s53
      %s56 = ssub.s32 %s36, %s55
      %p57 = scmp.eq.s32.totalorder %s56, 0
      %s59 = sadd.s32 %s58, 1
      %s60 = scalar_select %p57, %s58, %s59
      %p63 = pneg %p57
      %p64 = scmp.eq.s32.totalorder %s29, 3
      %p65 = por %p63, %p64
      %p66 = scmp.ne.s32.totalorder %s58, %s61
      %p67 = scmp.eq.s32.totalorder %s29, 0
      %p68 = por %p66, %p67
      %p69 = scmp.ne.s32.totalorder %s58, %s61
      %p70 = scmp.eq.s32.totalorder %s34, 3
      %p71 = por %p69, %p70
      %p72 = scmp.ne.s32.totalorder %s61, %s62
      %p73 = scmp.eq.s32.totalorder %s34, 0
      %p74 = por %p72, %p73
      %p75 = scmp.ne.s32.totalorder %s61, %s62
      %p76 = scmp.eq.s32.totalorder %s35, 3
      %p77 = por %p75, %p76
      %p79 = scmp.ne.s32.totalorder %s62, %s78
      %p80 = scmp.eq.s32.totalorder %s35, 0
      %p81 = por %p79, %p80
      %s82 = smul.u32 %s36, 4
      %s83 = sadd.s32 %s82, %s37
      %s84 = sld [smem:[#allocation5 + %s83]]
      %s85 = smul.u32 %s38, %s84
      %s86 = sld [smem:[#allocation4 + %s83]]
      %s87 = smul.u32 %s55, 4
      %s88 = sadd.s32 %s87, %s51
      %s89 = sld [smem:[#allocation5 + %s88]]
      %s90 = smul.u32 %s47, %s89
      %s91 = sld [smem:[#allocation4 + %s88]]
      %s92 = ssub.s32 %s86, %s91
      %s93 = ssub.s32 %s85, %s90
      %s94 = sor.u32 %s92, %s93
      %p95 = scmp.eq.s32.totalorder %s94, 0
      %s97 = sadd.s32 %s96, 1
      %s98 = scalar_select %p95, %s96, %s97
      %p101 = pneg %p95
      %p102 = scmp.eq.s32.totalorder %s29, 3
      %p103 = por %p101, %p102
      %p104 = scmp.ne.s32.totalorder %s96, %s99
      %p105 = scmp.eq.s32.totalorder %s29, 0
      %p106 = por %p104, %p105
      %p107 = scmp.ne.s32.totalorder %s96, %s99
      %p108 = scmp.eq.s32.totalorder %s34, 3
      %p109 = por %p107, %p108
      %p110 = scmp.ne.s32.totalorder %s99, %s100
      %p111 = scmp.eq.s32.totalorder %s34, 0
      %p112 = por %p110, %p111
      %p113 = scmp.ne.s32.totalorder %s99, %s100
      %p114 = scmp.eq.s32.totalorder %s35, 3
      %p115 = por %p113, %p114
      %p117 = scmp.ne.s32.totalorder %s100, %s116
      %p118 = scmp.eq.s32.totalorder %s35, 0
      %p119 = por %p117, %p118
      %s120 = smul.u32 %s36, 4
      %s121 = sadd.s32 %s120, %s37
      %s122 = sld [smem:[#allocation5 + %s121]]
      %s123 = smul.u32 %s38, %s122
      %s124 = sld [smem:[#allocation4 + %s121]]
      %s125 = smul.u32 %s55, 4
      %s126 = sadd.s32 %s125, %s51
      %s127 = sld [smem:[#allocation5 + %s126]]
      %s128 = smul.u32 %s47, %s127
      %s129 = sld [smem:[#allocation4 + %s126]]
      %s130 = ssub.s32 %s124, %s129
      %s131 = ssub.s32 %s123, %s128
      %s132 = sor.u32 %s130, %s131
      %p133 = scmp.eq.s32.totalorder %s132, 0
      %s135 = sadd.s32 %s134, 1
      %s136 = scalar_select %p133, %s134, %s135
      %p139 = pneg %p133
      %p140 = scmp.eq.s32.totalorder %s29, 3
      %p141 = por %p139, %p140
      %p142 = scmp.ne.s32.totalorder %s134, %s137
      %p143 = scmp.eq.s32.totalorder %s29, 0
      %p144 = por %p142, %p143
      %p145 = scmp.ne.s32.totalorder %s134, %s137
      %p146 = scmp.eq.s32.totalorder %s34, 3
      %p147 = por %p145, %p146
      %p148 = scmp.ne.s32.totalorder %s137, %s138
      %p149 = scmp.eq.s32.totalorder %s34, 0
      %p150 = por %p148, %p149
      %p151 = scmp.ne.s32.totalorder %s137, %s138
      %p152 = scmp.eq.s32.totalorder %s35, 3
      %p153 = por %p151, %p152
      %p155 = scmp.ne.s32.totalorder %s138, %s154
      %p156 = scmp.eq.s32.totalorder %s35, 0
      %p157 = por %p155, %p156
      %s158 = smul.u32 %s36, 4
      %s159 = sadd.s32 %s158, %s37
      %s160 = sld [smem:[#allocation4 + %s159]]
      %s161 = smul.u32 %s55, 4
      %s162 = sadd.s32 %s161, %s51
      %s163 = sld [smem:[#allocation4 + %s162]]
      %s164 = ssub.s32 %s160, %s163
      %s165 = ssub.s32 %s36, %s55
      %s166 = sor.u32 %s164, %s165
      %p167 = scmp.eq.s32.totalorder %s166, 0
      %s169 = sadd.s32 %s168, 1
      %s170 = scalar_select %p167, %s168, %s169
      %p173 = pneg %p167
      %p174 = scmp.eq.s32.totalorder %s29, 3
      %p175 = por %p173, %p174
      %p176 = scmp.ne.s32.totalorder %s168, %s171
      %p177 = scmp.eq.s32.totalorder %s29, 0
      %p178 = por %p176, %p177
      %p179 = scmp.ne.s32.totalorder %s168, %s171
      %p180 = scmp.eq.s32.totalorder %s34, 3
      %p181 = por %p179, %p180
      %p182 = scmp.ne.s32.totalorder %s171, %s172
      %p183 = scmp.eq.s32.totalorder %s34, 0
      %p184 = por %p182, %p183
      %p185 = scmp.ne.s32.totalorder %s171, %s172
      %p186 = scmp.eq.s32.totalorder %s35, 3
      %p187 = por %p185, %p186
      %p189 = scmp.ne.s32.totalorder %s172, %s188
      %p190 = scmp.eq.s32.totalorder %s35, 0
      %p191 = por %p189, %p190
      %s192 = ssub.s32 %s36, %s55
      %p193 = scmp.eq.s32.totalorder %s192, 0
      %s195 = sadd.s32 %s194, 1
      %s196 = scalar_select %p193, %s194, %s195
      %p199 = pneg %p193
      %p200 = scmp.eq.s32.totalorder %s29, 3
      %p201 = por %p199, %p200
      %p202 = scmp.ne.s32.totalorder %s194, %s197
      %p203 = scmp.eq.s32.totalorder %s29, 0
      %p204 = por %p202, %p203
      %p205 = scmp.ne.s32.totalorder %s194, %s197
      %p206 = scmp.eq.s32.totalorder %s34, 3
      %p207 = por %p205, %p206
      %p208 = scmp.ne.s32.totalorder %s197, %s198
      %p209 = scmp.eq.s32.totalorder %s34, 0
      %p210 = por %p208, %p209
      %p211 = scmp.ne.s32.totalorder %s197, %s198
      %p212 = scmp.eq.s32.totalorder %s35, 3
      %p213 = por %p211, %p212
      %p215 = scmp.ne.s32.totalorder %s198, %s214
      %p216 = scmp.eq.s32.totalorder %s35, 0
      %p217 = por %p215, %p216
      %p218 = scmp.le.s32.totalorder 1, %s29
      %p219 = scmp.lt.s32.totalorder %s29, 5
      %p220 = pnand %p218, %p219
      %p221 = pneg %p220
      // Predicated region
      $region9: #{tpu_custom_call.1} parent=5 // pred_check
        _
      $region10: #{tpu_custom_call.1} parent=5 // pred_check_branch
        %223 = sbr.rel (%p220) target = $region12
      $region11: #{tpu_custom_call.1} parent=5 // pred_region
        %s224 = ssub.s32 %s29, 1
        // Predicated region
        $region13: #{tpu_custom_call.1} parent=11 // pred_check
          %p225 = pneg %p74
        $region14: #{tpu_custom_call.1} parent=11 // pred_check_branch
          %227 = sbr.rel (%p225) target = $region16
        $region15: #{tpu_custom_call.1} parent=11 // pred_region
          %p228 = scmp.lt.s32.totalorder %s39, 0
          %s229 = scalar_select %p228, %s39, 0
          %s230 = smul.addr %s229, 8
          %s231 = scalar_lea.vmem %s2, %s230
        $region16: #{tpu_custom_call.1} parent=11 // pred_fallthru
          _
      $region12: #{tpu_custom_call.1} parent=5 // pred_fallthru
        _
      %p232 = scmp.lt.s32.totalorder %s29, 4
      // Predicated region
      $region17: #{tpu_custom_call.1} parent=5 // pred_check
        %p233 = pneg %p232
      $region18: #{tpu_custom_call.1} parent=5 // pred_check_branch
        %235 = sbr.rel (%p233) target = $region20
      $region19: #{tpu_custom_call.1} parent=5 // pred_region
        // Predicated region
        $region21: #{tpu_custom_call.1} parent=19 // pred_check
          %p236 = pneg %p106
        $region22: #{tpu_custom_call.1} parent=19 // pred_check_branch
          %238 = sbr.rel (%p236) target = $region24
        $region23: #{tpu_custom_call.1} parent=19 // pred_region
          %s239 = sand.u32 %s96, 1
          %s240 = scalar_lea.sflag [#allocation7], %s239
          %s241 = sand.u32 %s96, 1
          %s242 = smul.addr %s241, 256
          %s243 = scalar_lea.vmem [#allocation6], %s242
          %s244 = smul.u32 %s36, 4
          %s245 = sadd.s32 %s244, %s37
          %s246 = sld [smem:[#allocation5 + %s245]]
          %s247 = smul.u32 %s38, %s246
          %s248 = sld [smem:[#allocation4 + %s245]]
          %s249 = smul.u32 32, %s247
          %s251 = ssub.s32 4096, 4096
          %252 = vsyncadd %s240, %s251
          %s253 = smul.addr %s248, 32
          %s254 = sadd.s32 %s249, %s253
          %s255 = smul.addr %s254, 128
          %s256 = scalar_lea.hbm %s3, %s255
          %s257 = sshll.u32 %s243, 4
          %s258 = int_to_ptr.vmem [resolvable:$true] %s257
          %263 = dma.hbm_to_vmem [thread:$0]  %s256, 4096, %s258, %s240, 128, 128, 8
        $region24: #{tpu_custom_call.1} parent=19 // pred_fallthru
          _
        // Predicated region
        $region25: #{tpu_custom_call.1} parent=19 // pred_check
          %p264 = pneg %p144
        $region26: #{tpu_custom_call.1} parent=19 // pred_check_branch
          %266 = sbr.rel (%p264) target = $region28
        $region27: #{tpu_custom_call.1} parent=19 // pred_region
          %s267 = sand.u32 %s134, 1
          %s268 = scalar_lea.sflag [#allocation10], %s267
          %s269 = sand.u32 %s134, 1
          %s270 = smul.addr %s269, 128
          %s271 = scalar_lea.vmem [#allocation9], %s270
          %s272 = smul.u32 %s36, 4
          %s273 = sadd.s32 %s272, %s37
          %s274 = sld [smem:[#allocation5 + %s273]]
          %s275 = smul.u32 %s38, %s274
          %s276 = sld [smem:[#allocation4 + %s273]]
          %s278 = ssub.s32 2048, 2048
          %279 = vsyncadd %s268, %s278
          %s280 = smul.addr %s276, 16
          %s281 = sadd.s32 %s275, %s280
          %s282 = smul.addr %s281, 128
          %s283 = scalar_lea.hbm %s4, %s282
          %s284 = sshll.u32 %s271, 4
          %s285 = int_to_ptr.vmem [resolvable:$true] %s284
          %290 = dma.hbm_to_vmem [thread:$0]  %s283, 2048, %s285, %s268, 128, 128, 8
        $region28: #{tpu_custom_call.1} parent=19 // pred_fallthru
          _
        // Predicated region
        $region29: #{tpu_custom_call.1} parent=19 // pred_check
          %p291 = pneg %p178
        $region30: #{tpu_custom_call.1} parent=19 // pred_check_branch
          %293 = sbr.rel (%p291) target = $region32
        $region31: #{tpu_custom_call.1} parent=19 // pred_region
          %s294 = smul.u32 %s36, 4
          %s295 = sadd.s32 %s294, %s37
          %s296 = sld [smem:[#allocation4 + %s295]]
          %p297 = scmp.lt.s32.totalorder %s296, 3
          %s298 = scalar_select %p297, %s296, 3
          %p299 = scmp.lt.s32.totalorder %s36, 0
          %s300 = scalar_select %p299, %s36, 0
          %s301 = sadd.s32 %s300, %s298
          %s302 = smul.addr %s301, 8
          %s303 = scalar_lea.vmem %s5, %s302
          %s304 = smul.u32 %s36, 4
          %s305 = sadd.s32 %s304, %s37
          %s306 = sld [smem:[#allocation4 + %s305]]
        $region32: #{tpu_custom_call.1} parent=19 // pred_fallthru
          _
      $region20: #{tpu_custom_call.1} parent=5 // pred_fallthru
        _
      %p307 = scmp.le.s32.totalorder 1, %s29
      %p308 = scmp.lt.s32.totalorder %s29, 5
      %p309 = pnand %p307, %p308
      %p310 = pneg %p309
      // Predicated region
      $region33: #{tpu_custom_call.1} parent=5 // pred_check
        _
      $region34: #{tpu_custom_call.1} parent=5 // pred_check_branch
        %312 = sbr.rel (%p309) target = $region36
      $region35: #{tpu_custom_call.1} parent=5 // pred_region
        %s313 = ssub.s32 %s29, 1
        %s314 = sand.u32 %s99, 1
        %s315 = scalar_lea.sflag [#allocation7], %s314
        %s316 = sand.u32 %s99, 1
        %s317 = smul.addr %s316, 256
        %s318 = scalar_lea.vmem [#allocation6], %s317
        // Predicated region
        $region37: #{tpu_custom_call.1} parent=35 // pred_check
          %p319 = pneg %p112
        $region38: #{tpu_custom_call.1} parent=35 // pred_check_branch
          %321 = sbr.rel (%p319) target = $region40
        $region39: #{tpu_custom_call.1} parent=35 // pred_region
          %322 = dma.done %s315, 4096
        $region40: #{tpu_custom_call.1} parent=35 // pred_fallthru
          _
        %s323 = sand.u32 %s137, 1
        %s324 = scalar_lea.sflag [#allocation10], %s323
        %s325 = sand.u32 %s137, 1
        %s326 = smul.addr %s325, 128
        %s327 = scalar_lea.vmem [#allocation9], %s326
        // Predicated region
        $region41: #{tpu_custom_call.1} parent=35 // pred_check
          %p328 = pneg %p150
        $region42: #{tpu_custom_call.1} parent=35 // pred_check_branch
          %330 = sbr.rel (%p328) target = $region44
        $region43: #{tpu_custom_call.1} parent=35 // pred_region
          %331 = dma.done %s324, 2048
        $region44: #{tpu_custom_call.1} parent=35 // pred_fallthru
          _
        %p332 = scmp.lt.s32.totalorder %s39, 0
        %s333 = scalar_select %p332, %s39, 0
        %s334 = smul.addr %s333, 8
        %s335 = scalar_lea.vmem %s2, %s334
        %p336 = pneg %p74
        %p337 = pneg %p71
        %s338 = sand.u32 %s99, 1
        %s339 = scalar_lea.sflag [#allocation7], %s338
        %s340 = sand.u32 %s99, 1
        %s341 = smul.addr %s340, 256
        %s342 = scalar_lea.vmem [#allocation6], %s341
        %p343 = pneg %p112
        %p344 = pneg %p109
        %s345 = sand.u32 %s137, 1
        %s346 = scalar_lea.sflag [#allocation10], %s345
        %s347 = sand.u32 %s137, 1
        %s348 = smul.addr %s347, 128
        %s349 = scalar_lea.vmem [#allocation9], %s348
        %p350 = pneg %p150
        %p351 = pneg %p147
        %s352 = smul.u32 %s39, 4
        %s353 = sadd.s32 %s352, %s40
        %s354 = sld [smem:[#allocation4 + %s353]]
        %p355 = scmp.lt.s32.totalorder %s354, 3
        %s356 = scalar_select %p355, %s354, 3
        %p357 = scmp.lt.s32.totalorder %s39, 0
        %s358 = scalar_select %p357, %s39, 0
        %s359 = sadd.s32 %s358, %s356
        %s360 = smul.addr %s359, 8
        %s361 = scalar_lea.vmem %s5, %s360
        %p362 = pneg %p184
        %p363 = pneg %p181
        %p364 = pneg %p210
        %p365 = pneg %p207
        %p366 = scmp.lt.s32.totalorder %s39, 0
        %s367 = scalar_select %p366, %s39, 0
        %s368 = smul.addr %s367, 8
        %s369 = scalar_lea.vmem %s2, %s368
        %s370 = smul.u32 %s39, 4
        %s371 = sadd.s32 %s370, %s40
        %s372 = sld [smem:[#allocation5 + %s371]]
        %s373 = smul.u32 %s41, %s372
        %s374 = sld [smem:[#allocation4 + %s371]]
        %s375 = smul.u32 32, %s373
        %s376 = smul.u32 %s39, 4
        %s377 = sadd.s32 %s376, %s40
        %s378 = sld [smem:[#allocation5 + %s377]]
        %s379 = smul.u32 %s41, %s378
        %s380 = sld [smem:[#allocation4 + %s377]]
        %s381 = smul.u32 %s39, 4
        %s382 = sadd.s32 %s381, %s40
        %s383 = sld [smem:[#allocation4 + %s382]]
        %p384 = scmp.lt.s32.totalorder %s383, 3
        %s385 = scalar_select %p384, %s383, 3
        %p386 = scmp.lt.s32.totalorder %s39, 0
        %s387 = scalar_select %p386, %s39, 0
        %s388 = sadd.s32 %s387, %s385
        %s389 = smul.addr %s388, 8
        %s390 = scalar_lea.vmem %s5, %s389
        %s391 = smul.u32 %s39, 4
        %s392 = sadd.s32 %s391, %s40
        %s393 = sld [smem:[#allocation4 + %s392]]
        %p394 = scmp.eq.s32.totalorder %s40, 0
        %p395 = scmp.eq.s32.totalorder %s41, 0
        %p396 = pnand %p394, %p395
        %p397 = pneg %p396
        // Predicated region
        $region45: #{tpu_custom_call.1} parent=35 // pred_check
          _
        $region46: #{tpu_custom_call.1} parent=35 // pred_check_branch
          %399 = sbr.rel (%p396) target = $region48
        $region47: #{tpu_custom_call.1} parent=35 // pred_region
          %400 = vst [vmem:[#allocation2] sm:$0xff] 0.0
        $region48: #{tpu_custom_call.1} parent=35 // pred_fallthru
          _
        %s401 = smul.u32 %s39, 4
        %s402 = sadd.s32 %s401, %s40
        %s403 = sld [smem:[#allocation5 + %s402]]
        %p404 = scmp.gt.s32.totalorder %s403, 0
        // Predicated region
        $region49: #{tpu_custom_call.1} parent=35 // pred_check
          %p405 = pneg %p404
        $region50: #{tpu_custom_call.1} parent=35 // pred_check_branch
          %407 = sbr.rel (%p405) target = $region52
        $region51: #{tpu_custom_call.1} parent=35 // pred_region
          %v408 = vld [vmem:[%s369] sm:$0xff]
          %v409 = vld [vmem:[%s318] sm:$0xff]
          %v410 = vld [vmem:[%s318 + $0x8] sm:$0xff]
          %v411 = vld [vmem:[%s318 + $0x10] sm:$0xff]
          %v412 = vld [vmem:[%s318 + $0x18] sm:$0xff]
          %v413 = vld [vmem:[%s318 + $0x20] sm:$0xff]
          %v414 = vld [vmem:[%s318 + $0x28] sm:$0xff]
          %v415 = vld [vmem:[%s318 + $0x30] sm:$0xff]
          %v416 = vld [vmem:[%s318 + $0x38] sm:$0xff]
          %v417 = vld [vmem:[%s318 + $0x40] sm:$0xff]
          %v418 = vld [vmem:[%s318 + $0x48] sm:$0xff]
          %v419 = vld [vmem:[%s318 + $0x50] sm:$0xff]
          %v420 = vld [vmem:[%s318 + $0x58] sm:$0xff]
          %v421 = vld [vmem:[%s318 + $0x60] sm:$0xff]
          %v422 = vld [vmem:[%s318 + $0x68] sm:$0xff]
          %v423 = vld [vmem:[%s318 + $0x70] sm:$0xff]
          %v424 = vld [vmem:[%s318 + $0x78] sm:$0xff]
          %v425 = vld [vmem:[%s318 + $0x80] sm:$0xff]
          %v426 = vld [vmem:[%s318 + $0x88] sm:$0xff]
          %v427 = vld [vmem:[%s318 + $0x90] sm:$0xff]
          %v428 = vld [vmem:[%s318 + $0x98] sm:$0xff]
          %v429 = vld [vmem:[%s318 + $0xa0] sm:$0xff]
          %v430 = vld [vmem:[%s318 + $0xa8] sm:$0xff]
          %v431 = vld [vmem:[%s318 + $0xb0] sm:$0xff]
          %v432 = vld [vmem:[%s318 + $0xb8] sm:$0xff]
          %v433 = vld [vmem:[%s318 + $0xc0] sm:$0xff]
          %v434 = vld [vmem:[%s318 + $0xc8] sm:$0xff]
          %v435 = vld [vmem:[%s318 + $0xd0] sm:$0xff]
          %v436 = vld [vmem:[%s318 + $0xd8] sm:$0xff]
          %v437 = vld [vmem:[%s318 + $0xe0] sm:$0xff]
          %v438 = vld [vmem:[%s318 + $0xe8] sm:$0xff]
          %v439 = vld [vmem:[%s318 + $0xf0] sm:$0xff]
          %v440 = vld [vmem:[%s318 + $0xf8] sm:$0xff]
          %v441 = vld [vmem:[%s327] sm:$0xff]
          %v442 = vld [vmem:[%s327 + $0x8] sm:$0xff]
          %v443 = vld [vmem:[%s327 + $0x10] sm:$0xff]
          %v444 = vld [vmem:[%s327 + $0x18] sm:$0xff]
          %v445 = vld [vmem:[%s327 + $0x20] sm:$0xff]
          %v446 = vld [vmem:[%s327 + $0x28] sm:$0xff]
          %v447 = vld [vmem:[%s327 + $0x30] sm:$0xff]
          %v448 = vld [vmem:[%s327 + $0x38] sm:$0xff]
          %v449 = vld [vmem:[%s327 + $0x40] sm:$0xff]
          %v450 = vld [vmem:[%s327 + $0x48] sm:$0xff]
          %v451 = vld [vmem:[%s327 + $0x50] sm:$0xff]
          %v452 = vld [vmem:[%s327 + $0x58] sm:$0xff]
          %v453 = vld [vmem:[%s327 + $0x60] sm:$0xff]
          %v454 = vld [vmem:[%s327 + $0x68] sm:$0xff]
          %v455 = vld [vmem:[%s327 + $0x70] sm:$0xff]
          %v456 = vld [vmem:[%s327 + $0x78] sm:$0xff]
          %457 = vmatprep.subr.mxu0 0.0
          %458 = vmatpush1.xpose.msra.mxu0 %v409
          %459 = vmatprep.subr.mxu0 0.0
          %460 = vmatpush1.xpose.msra.mxu0 %v410
          %461 = vmatprep.subr.mxu0 0.0
          %462 = vmatpush1.xpose.msra.mxu0 %v411
          %463 = vmatprep.subr.mxu0 0.0
          %464 = vmatpush1.xpose.msra.mxu0 %v412
          %465 = vmatprep.subr.mxu0 0.0
          %466 = vmatpush1.xpose.msra.mxu0 %v413
          %467 = vmatprep.subr.mxu0 0.0
          %468 = vmatpush1.xpose.msra.mxu0 %v414
          %469 = vmatprep.subr.mxu0 0.0
          %470 = vmatpush1.xpose.msra.mxu0 %v415
          %471 = vmatprep.subr.mxu0 0.0
          %472 = vmatpush1.xpose.msra.mxu0 %v416
          %473 = vmatprep.subr.mxu0 0.0
          %474 = vmatpush1.xpose.msra.mxu0 %v417
          %475 = vmatprep.subr.mxu0 0.0
          %476 = vmatpush1.xpose.msra.mxu0 %v418
          %477 = vmatprep.subr.mxu0 0.0
          %478 = vmatpush1.xpose.msra.mxu0 %v419
          %479 = vmatprep.subr.mxu0 0.0
          %480 = vmatpush1.xpose.msra.mxu0 %v420
          %481 = vmatprep.subr.mxu0 0.0
          %482 = vmatpush1.xpose.msra.mxu0 %v421
          %483 = vmatprep.subr.mxu0 0.0
          %484 = vmatpush1.xpose.msra.mxu0 %v422
          %485 = vmatprep.subr.mxu0 0.0
          %486 = vmatpush1.xpose.msra.mxu0 %v423
          %487 = vmatprep.subr.mxu0 0.0
          %488 = vmatpush1.xpose.msra.mxu0 %v424
          %489 = vmatprep.subr.mxu0 0.0
          %490 = vmatpush1.xpose.msra.mxu0 %v425
          %491 = vmatprep.subr.mxu0 0.0
          %492 = vmatpush1.xpose.msra.mxu0 %v426
          %493 = vmatprep.subr.mxu0 0.0
          %494 = vmatpush1.xpose.msra.mxu0 %v427
          %495 = vmatprep.subr.mxu0 0.0
          %496 = vmatpush1.xpose.msra.mxu0 %v428
          %497 = vmatprep.subr.mxu0 0.0
          %498 = vmatpush1.xpose.msra.mxu0 %v429
          %499 = vmatprep.subr.mxu0 0.0
          %500 = vmatpush1.xpose.msra.mxu0 %v430
          %501 = vmatprep.subr.mxu0 0.0
          %502 = vmatpush1.xpose.msra.mxu0 %v431
          %503 = vmatprep.subr.mxu0 0.0
          %504 = vmatpush1.xpose.msra.mxu0 %v432
          %505 = vmatprep.subr.mxu0 0.0
          %506 = vmatpush1.xpose.msra.mxu0 %v433
          %507 = vmatprep.subr.mxu0 0.0
          %508 = vmatpush1.xpose.msra.mxu0 %v434
          %509 = vmatprep.subr.mxu0 0.0
          %510 = vmatpush1.xpose.msra.mxu0 %v435
          %511 = vmatprep.subr.mxu0 0.0
          %512 = vmatpush1.xpose.msra.mxu0 %v436
          %513 = vmatprep.subr.mxu0 0.0
          %514 = vmatpush1.xpose.msra.mxu0 %v437
          %515 = vmatprep.subr.mxu0 0.0
          %516 = vmatpush1.xpose.msra.mxu0 %v438
          %517 = vmatprep.subr.mxu0 0.0
          %518 = vmatpush1.xpose.msra.mxu0 %v439
          %519 = vmatprep.subr.mxu0 0.0
          %520 = vmatpush1.xpose.msra.mxu0 %v440
          %521 = vmatprep.mubr.f32.mxu0 0.0
          %522 = vmatmul.mubr.f32.gmra.mrb[0].mxu0 %v408
          %v523 = vpop.f32.mrb[0].mxu0
          %v524 = vadd.f32 0.0, %v523
          %v525 = vpop.f32.mrb[0].mxu0
          %v526 = vadd.f32 0.0, %v525
          %527 = vdwg.mxu0
          %v528 = vxor.u32 %v524, 2147483648
          %v529 = vmul.f32 %v528, 1.442695
          %v530 = vpow.pop %v529
          %v531 = vadd.f32 %v530, 1.0
          %v532 = vrcp.pop %v531
          %v533 = vmul.f32 1.0, %v532
          %v534 = vmul.f32 %v524, %v533
          %v535 = vmul.f32 %v534, %v526
          %v536 = vld [vmem:[%s390] sm:$0xff]
          %538 = vset.pattern.permute.xlu0 0
          %539 = vperm.xlu0 %538, %v536
          %v540 = vpop.permute.xlu0 %539
          %v542 = vmul.f32 %v535, %v540
          %v543 = vld [vmem:[#allocation2] sm:$0xff]
          %544 = vmatprep.subr.mxu0 0.0
          %545 = vmatpush1.xpose.msra.mxu0 %v441
          %546 = vmatprep.subr.mxu0 0.0
          %547 = vmatpush1.xpose.msra.mxu0 %v442
          %548 = vmatprep.subr.mxu0 0.0
          %549 = vmatpush1.xpose.msra.mxu0 %v443
          %550 = vmatprep.subr.mxu0 0.0
          %551 = vmatpush1.xpose.msra.mxu0 %v444
          %552 = vmatprep.subr.mxu0 0.0
          %553 = vmatpush1.xpose.msra.mxu0 %v445
          %554 = vmatprep.subr.mxu0 0.0
          %555 = vmatpush1.xpose.msra.mxu0 %v446
          %556 = vmatprep.subr.mxu0 0.0
          %557 = vmatpush1.xpose.msra.mxu0 %v447
          %558 = vmatprep.subr.mxu0 0.0
          %559 = vmatpush1.xpose.msra.mxu0 %v448
          %560 = vmatprep.subr.mxu0 0.0
          %561 = vmatpush1.xpose.msra.mxu0 %v449
          %562 = vmatprep.subr.mxu0 0.0
          %563 = vmatpush1.xpose.msra.mxu0 %v450
          %564 = vmatprep.subr.mxu0 0.0
          %565 = vmatpush1.xpose.msra.mxu0 %v451
          %566 = vmatprep.subr.mxu0 0.0
          %567 = vmatpush1.xpose.msra.mxu0 %v452
          %568 = vmatprep.subr.mxu0 0.0
          %569 = vmatpush1.xpose.msra.mxu0 %v453
          %570 = vmatprep.subr.mxu0 0.0
          %571 = vmatpush1.xpose.msra.mxu0 %v454
          %572 = vmatprep.subr.mxu0 0.0
          %573 = vmatpush1.xpose.msra.mxu0 %v455
          %574 = vmatprep.subr.mxu0 0.0
          %575 = vmatpush1.xpose.msra.mxu0 %v456
          %576 = vmatprep.subr.mxu0 0.0
          %577 = vmatpush1.xpose.msra.mxu0 0.0
          %578 = vmatprep.subr.mxu0 0.0
          %579 = vmatpush1.xpose.msra.mxu0 0.0
          %580 = vmatprep.subr.mxu0 0.0
          %581 = vmatpush1.xpose.msra.mxu0 0.0
          %582 = vmatprep.subr.mxu0 0.0
          %583 = vmatpush1.xpose.msra.mxu0 0.0
          %584 = vmatprep.subr.mxu0 0.0
          %585 = vmatpush1.xpose.msra.mxu0 0.0
          %586 = vmatprep.subr.mxu0 0.0
          %587 = vmatpush1.xpose.msra.mxu0 0.0
          %588 = vmatprep.subr.mxu0 0.0
          %589 = vmatpush1.xpose.msra.mxu0 0.0
          %590 = vmatprep.subr.mxu0 0.0
          %591 = vmatpush1.xpose.msra.mxu0 0.0
          %592 = vmatprep.subr.mxu0 0.0
          %593 = vmatpush1.xpose.msra.mxu0 0.0
          %594 = vmatprep.subr.mxu0 0.0
          %595 = vmatpush1.xpose.msra.mxu0 0.0
          %596 = vmatprep.subr.mxu0 0.0
          %597 = vmatpush1.xpose.msra.mxu0 0.0
          %598 = vmatprep.subr.mxu0 0.0
          %599 = vmatpush1.xpose.msra.mxu0 0.0
          %600 = vmatprep.subr.mxu0 0.0
          %601 = vmatpush1.xpose.msra.mxu0 0.0
          %602 = vmatprep.subr.mxu0 0.0
          %603 = vmatpush1.xpose.msra.mxu0 0.0
          %604 = vmatprep.subr.mxu0 0.0
          %605 = vmatpush1.xpose.msra.mxu0 0.0
          %606 = vmatprep.subr.mxu0 0.0
          %607 = vmatpush1.xpose.msra.mxu0 0.0
          %608 = vmatprep.mubr.f32.mxu0 0.0
          %609 = vmatmul.mubr.f32.gmra.mrb[0].mxu0 %v542
          %v610 = vpop.f32.mrb[0].mxu0
          %v611 = vadd.f32 0.0, %v610
          %v612 = vpop.f32.mrb[0].mxu0
          %613 = vdwg.mxu0
          %v614 = vadd.f32 %v543, %v611
          %615 = vst [vmem:[#allocation2] sm:$0xff] %v614
        $region52: #{tpu_custom_call.1} parent=35 // pred_fallthru
          _
        %p616 = scmp.eq.s32.totalorder %s40, 3
        %p617 = pnand %p616, %p395
        %p618 = pneg %p617
        // Predicated region
        $region53: #{tpu_custom_call.1} parent=35 // pred_check
          _
        $region54: #{tpu_custom_call.1} parent=35 // pred_check_branch
          %620 = sbr.rel (%p617) target = $region56
        $region55: #{tpu_custom_call.1} parent=35 // pred_region
          %v621 = vld [vmem:[#allocation2] sm:$0xff]
          %622 = vst [vmem:[#allocation11] sm:$0xff] %v621
        $region56: #{tpu_custom_call.1} parent=35 // pred_fallthru
          _
        // Predicated region
        $region57: #{tpu_custom_call.1} parent=35 // pred_check
          %p623 = pneg %p207
        $region58: #{tpu_custom_call.1} parent=35 // pred_check_branch
          %625 = sbr.rel (%p623) target = $region60
        $region59: #{tpu_custom_call.1} parent=35 // pred_region
          %s627 = ssub.s32 128, 128
          %628 = vsyncadd [#allocation8], %s627
          %s629 = smul.addr %s39, 128
          %s630 = scalar_lea.hbm %s6, %s629
          %s632 = sshll.u32 [#allocation11], 4
          %s633 = int_to_ptr.vmem [resolvable:$true] %s632
          %635 = dma.vmem_to_hbm [thread:$0]  %s633, 128, %s630, [#allocation8]
        $region60: #{tpu_custom_call.1} parent=35 // pred_fallthru
          _
        // Predicated region
        $region61: #{tpu_custom_call.1} parent=35 // pred_check
          %p636 = pneg %p207
        $region62: #{tpu_custom_call.1} parent=35 // pred_check_branch
          %638 = sbr.rel (%p636) target = $region64
        $region63: #{tpu_custom_call.1} parent=35 // pred_region
          %639 = dma.done [#allocation8], 128
        $region64: #{tpu_custom_call.1} parent=35 // pred_fallthru
          _
      $region36: #{tpu_custom_call.1} parent=5 // pred_fallthru
        _
      %p640 = scmp.le.s32.totalorder 2, %s29
      // Predicated region
      $region65: #{tpu_custom_call.1} parent=5 // pred_check
        %p641 = pneg %p640
      $region66: #{tpu_custom_call.1} parent=5 // pred_check_branch
        %643 = sbr.rel (%p641) target = $region68
      $region67: #{tpu_custom_call.1} parent=5 // pred_region
        %s644 = ssub.s32 %s29, 2
      $region68: #{tpu_custom_call.1} parent=5 // pred_fallthru
        _
    $region6: #{tpu_custom_call.1} parent=1 // loop_footer
      %s33 = sadd.s32 1, %s29
    $region7: #{tpu_custom_call.1} parent=1 // loop_footer_branch
      %28 = sbr.rel target = $region3
    $region8: #{tpu_custom_call.1} parent=1 // loop_exit
      _
    %645 = vsyncpa [#allocation7], 1
    %s646 = scalar_lea.sflag [#allocation7], 1
    %647 = vsyncpa %s646, 1
    %648 = vsyncpa [#allocation10], 1
    %s649 = scalar_lea.sflag [#allocation10], 1
    %650 = vsyncpa %s649, 1
    %651 = vsyncpa [#allocation8], 1
    %s652 = scalar_lea.sflag [#allocation8], 1
    %653 = vsyncpa %s652, 1

</llo_original>
